<compile_context>
chip_gen: v6e
topology: v6e:2x2x1
jax: 0.10.0
libtpu: 0.0.40
codegen_flags: <defaults>
</compile_context>

<pallas_src>
import math

import jax
import jax.numpy as jnp
from jax.experimental import pallas as pl
from jax.experimental.pallas import tpu as pltpu

CLAMP_LO = 0.01
CLAMP_HI = 50.0


def _snake_beta_kernel(x_ref, alpha_ref, inv_beta_ref, o_ref):
    # x_ref / o_ref:           (C, tT) block (batch dim squeezed out).
    # alpha_ref / inv_beta_ref: (C, 1) f32 params, resident across grid steps.
    x = x_ref[...]
    alpha = alpha_ref[...].astype(x.dtype)        # (C, 1) -> broadcast over T
    inv_beta = inv_beta_ref[...].astype(x.dtype)  # (C, 1)
    s = jnp.sin(x * alpha)
    o_ref[...] = x + inv_beta * (s * s)


def _choose_t_tile(C, T, itemsize):
    """Pick a lane-dense T tile.

    - If T is not a multiple of 128 (small test shapes), use the full T
      (block equal to the full dim is always legal).
    - Otherwise pick a multiple of 128 sized so one block is ~2 MiB, i.e.
      ~8 MiB with double-buffered input + output -- safe on v5e/v6e (128 MiB)
      and on v7x (64 MiB physical VMEM).
    """
    if T % 128 != 0:
        return T
    budget_bytes = 2 * 1024 * 1024
    tT = budget_bytes // max(1, C * itemsize)
    tT = (tT // 128) * 128
    tT = max(128, min(tT, 2048))
    return min(tT, T)


def snake_beta(x, log_alpha, log_beta):
    """x: (B, C, T); log_alpha, log_beta: (C,). Returns (B, C, T)."""
    B, C, T = x.shape

    # Hoisted per-channel parameter math, kept in f32 (matches the PyTorch
    # reference which computes parameters in full precision).
    alpha = jnp.clip(jnp.exp(log_alpha.astype(jnp.float32)), CLAMP_LO, CLAMP_HI)
    beta = jnp.clip(jnp.exp(log_beta.astype(jnp.float32)), CLAMP_LO, CLAMP_HI)
    alpha = alpha.reshape(C, 1)
    inv_beta = (1.0 / beta).reshape(C, 1)

    tT = _choose_t_tile(C, T, x.dtype.itemsize)
    grid = (B, pl.cdiv(T, tT))

    return pl.pallas_call(
        _snake_beta_kernel,
        out_shape=jax.ShapeDtypeStruct((B, C, T), x.dtype),
        grid_spec=pltpu.PrefetchScalarGridSpec(
            num_scalar_prefetch=0,
            grid=grid,
            in_specs=[
                # One (C, tT) time-tile of one batch row per step.
                pl.BlockSpec((pl.Squeezed(), C, tT), lambda b, t: (b, 0, t)),
                # Per-channel params stay resident across the whole grid.
                pl.BlockSpec((C, 1), lambda b, t: (0, 0)),
                pl.BlockSpec((C, 1), lambda b, t: (0, 0)),
            ],
            out_specs=pl.BlockSpec((pl.Squeezed(), C, tT), lambda b, t: (b, 0, t)),
        ),
        compiler_params=pltpu.CompilerParams(
            dimension_semantics=("parallel", "parallel"),
        ),
    )(x, alpha, inv_beta)


def snake_beta_ref(x, log_alpha, log_beta):
    alpha = jnp.clip(jnp.exp(log_alpha), CLAMP_LO, CLAMP_HI)[None, :, None]
    beta = jnp.clip(jnp.exp(log_beta), CLAMP_LO, CLAMP_HI)[None, :, None]
    return x + (1.0 / beta) * jnp.sin(x * alpha) ** 2


if __name__ == "__main__":
    B, C, T = 2, 4, 16
    key = jax.random.PRNGKey(0)
    kx, ka, kb = jax.random.split(key, 3)

    x = jax.random.normal(kx, (B, C, T), dtype=jnp.float32)

    # Deterministic parameter init consistent with __init__ (zeros + log(1.0)),
    # perturbed slightly so the per-channel broadcast is actually exercised.
    log_alpha = jnp.zeros((C,), jnp.float32) + math.log(1.0) \
        + 0.1 * jax.random.normal(ka, (C,), dtype=jnp.float32)
    log_beta = jnp.zeros((C,), jnp.float32) + math.log(1.0) \
        + 0.1 * jax.random.normal(kb, (C,), dtype=jnp.float32)

    out = snake_beta(x, log_alpha, log_beta)
    out = jax.block_until_ready(out)

    ref = snake_beta_ref(x, log_alpha, log_beta)
    assert out.shape == (B, C, T)
    assert jnp.allclose(out, ref, atol=1e-5, rtol=1e-5), \
        f"max err {jnp.max(jnp.abs(out - ref))}"

    # Also exercise a realistic, lane-aligned audio-ish shape to cover the
    # tiled path (T multiple of 128 -> tT = multiple of 128, multi-tile grid).
    B2, C2, T2 = 2, 64, 4096
    x2 = jax.random.normal(kx, (B2, C2, T2), dtype=jnp.float32)
    la2 = 0.1 * jax.random.normal(ka, (C2,), dtype=jnp.float32)
    lb2 = 0.1 * jax.random.normal(kb, (C2,), dtype=jnp.float32)
    out2 = jax.block_until_ready(snake_beta(x2, la2, lb2))
    ref2 = snake_beta_ref(x2, la2, lb2)
    assert jnp.allclose(out2, ref2, atol=1e-5, rtol=1e-5), \
        f"max err {jnp.max(jnp.abs(out2 - ref2))}"

    print("KERNEL_OK")
</pallas_src>

<mosaic_0001>
module attributes {stable_mosaic.version = 11 : i64} {
  func.func @_snake_beta_kernel(%arg0: i32, %arg1: i32, %arg2: memref<1x4x16xf32, #tpu.memory_space<vmem>>, %arg3: memref<4x1xf32, #tpu.memory_space<vmem>>, %arg4: memref<4x1xf32, #tpu.memory_space<vmem>>, %arg5: memref<1x4x16xf32, #tpu.memory_space<vmem>>) attributes {dimension_semantics = [#tpu.dimension_semantics<parallel>, #tpu.dimension_semantics<parallel>], iteration_bounds = array<i64: 2, 1>, scalar_prefetch = 0 : i64, scratch_operands = 0 : i64, tpu.core_type = #tpu.core_type<tc>, window_params = [{transform_indices = @transform_0, window_bounds = array<i64: 1, 4, 16>}, {pipeline_mode = #tpu.pipeline_mode<synchronous>, transform_indices = @transform_1, window_bounds = array<i64: 4, 1>}, {pipeline_mode = #tpu.pipeline_mode<synchronous>, transform_indices = @transform_2, window_bounds = array<i64: 4, 1>}, {transform_indices = @transform_3, window_bounds = array<i64: 1, 4, 16>}]} {
    %c0 = arith.constant 0 : index
    %c0_0 = arith.constant 0 : index
    %c0_1 = arith.constant 0 : index
    %0 = vector.load %arg2[%c0, %c0_0, %c0_1] : memref<1x4x16xf32, #tpu.memory_space<vmem>>, vector<1x4x16xf32>
    %1 = vector.shape_cast %0 : vector<1x4x16xf32> to vector<4x16xf32>
    %c0_2 = arith.constant 0 : index
    %c0_3 = arith.constant 0 : index
    %2 = vector.load %arg3[%c0_2, %c0_3] : memref<4x1xf32, #tpu.memory_space<vmem>>, vector<4x1xf32>
    %c0_4 = arith.constant 0 : index
    %c0_5 = arith.constant 0 : index
    %3 = vector.load %arg4[%c0_4, %c0_5] : memref<4x1xf32, #tpu.memory_space<vmem>>, vector<4x1xf32>
    %4 = vector.broadcast %2 : vector<4x1xf32> to vector<4x16xf32>
    %5 = arith.mulf %1, %4 : vector<4x16xf32>
    %6 = math.sin %5 : vector<4x16xf32>
    %7 = arith.mulf %6, %6 : vector<4x16xf32>
    %8 = vector.broadcast %3 : vector<4x1xf32> to vector<4x16xf32>
    %9 = arith.mulf %8, %7 : vector<4x16xf32>
    %10 = arith.addf %1, %9 : vector<4x16xf32>
    %c0_6 = arith.constant 0 : index
    %c0_7 = arith.constant 0 : index
    %c0_8 = arith.constant 0 : index
    %11 = vector.load %arg5[%c0_6, %c0_7, %c0_8] : memref<1x4x16xf32, #tpu.memory_space<vmem>>, vector<1x4x16xf32>
    %12 = vector.shape_cast %11 : vector<1x4x16xf32> to vector<4x16xf32>
    %13 = vector.shape_cast %10 : vector<4x16xf32> to vector<1x4x16xf32>
    tpu.vector_store %arg5[%c0_6, %c0_7, %c0_8], %13 {strides = array<i32>} : memref<1x4x16xf32, #tpu.memory_space<vmem>>, vector<1x4x16xf32>,
    return
  }
  func.func @transform_0(%arg0: i32, %arg1: i32) -> (i32, i32, i32) {
    %c0_i32 = arith.constant 0 : i32
    %c0_i32_0 = arith.constant 0 : i32
    return %arg0, %c0_i32, %arg1 : i32, i32, i32
  }
  func.func @transform_1(%arg0: i32, %arg1: i32) -> (i32, i32) {
    %c0_i32 = arith.constant 0 : i32
    %c0_i32_0 = arith.constant 0 : i32
    %c0_i32_1 = arith.constant 0 : i32
    return %c0_i32, %c0_i32_0 : i32, i32
  }
  func.func @transform_2(%arg0: i32, %arg1: i32) -> (i32, i32) {
    %c0_i32 = arith.constant 0 : i32
    %c0_i32_0 = arith.constant 0 : i32
    %c0_i32_1 = arith.constant 0 : i32
    return %c0_i32, %c0_i32_0 : i32, i32
  }
  func.func @transform_3(%arg0: i32, %arg1: i32) -> (i32, i32, i32) {
    %c0_i32 = arith.constant 0 : i32
    %c0_i32_0 = arith.constant 0 : i32
    return %arg0, %c0_i32, %arg1 : i32, i32, i32
  }
}

</mosaic_0001>

<llo_original>
// kernel: tpu_custom_call.1
$region0: #{tpu_custom_call.1}
  #allocation0 [shape = 'u32[]', space=smem, size = 0x4, offset = 0x4, fixed_abs, tag = 'smem constant byte address 0x4 - core index']
  #allocation1 [shape = 'u32[144,128]{1,0:T(1,128)}', space=vmem, size = 0x12000, scoped, tag = 'internal scratch']
  %s0 = inlined_call_operand.vmem [shape: f32[2,4,16], index: 0, kind: input, shape index: {}]
  %s1 = inlined_call_operand.vmem [shape: f32[4,1], index: 1, kind: input, shape index: {}]
  %s2 = inlined_call_operand.vmem [shape: f32[4,1], index: 2, kind: input, shape index: {}]
  %s3 = inlined_call_operand.hbm [shape: f32[2,4,16], index: 3, kind: output, shape index: {}]
  %s4 = sld [smem:[#allocation0]]
  $region45: #{tpu_custom_call.1} parent=0
    _
  %s6 = ssub.s32 1, %s4
  %s7 = scalar_select 0, %s6, %s4
  $region1: #{tpu_custom_call.1} parent=0
    #allocation2 [shape = 'u8[4096]{0}', space=vmem, size = 0x1000, scoped, tag = 'output window, operand 0']
    #allocation3 [shape = 's32[2]{0}', space=sflag, size = 0x8, scoped, tag = 'scoped memory for tpu_custom_call.1']
    %8 = vsyncpa [#allocation3], 0
    %s9 = scalar_lea.sflag [#allocation3], 1
    %10 = vsyncpa %s9, 0
    loop: start=0, step=1, limit=4
    $region2: #{tpu_custom_call.1} parent=1 // loop_pre_header
      _
    $region3: #{tpu_custom_call.1} parent=1 // loop_header
      %s12 = sphi 0, %s16
      %p13 = scmp.ge.s32.totalorder %s12, 4
      %s19 = sphi 0, %s31
      %s20 = sphi 0, %s27
      %s21 = sphi 0, %s19
      %s22 = sphi 0, %s20
      %s23 = sphi 0, %s21
      %s24 = sphi 0, %s22
      %s36 = sphi 0, %s38
      %s39 = sphi 0, %s36
      %s40 = sphi 0, %s39
      %s56 = sphi 0, %s40
      %s60 = sphi 0, %s60
      %s62 = sphi 0, %s60
      %s63 = sphi 0, %s62
      %s77 = sphi 0, %s63
      %s81 = sphi 0, %s81
      %s83 = sphi 0, %s81
      %s84 = sphi 0, %s83
      %s98 = sphi 0, %s84
      %s106 = sphi 0, %s108
      %s109 = sphi 0, %s106
      %s110 = sphi 0, %s109
      %s126 = sphi 0, %s110
    $region4: #{tpu_custom_call.1} parent=1 // loop_header_branch
      %15 = sbr.rel (%p13) target = $region8
    $region5: #{tpu_custom_call.1} parent=1 // loop_body
      %s17 = ssub.s32 %s12, 1
      %s18 = ssub.s32 %s12, 2
      %s25 = sadd.s32 1, %s20
      %p26 = scmp.ge.s32.totalorder %s25, 1
      %s27 = scalar_select %p26, 0, %s25
      %s28 = sadd.s32 1, %s19
      %s29 = scalar_select %p26, %s28, %s19
      %p30 = scmp.ge.s32.totalorder %s29, 2
      %s31 = scalar_select %p30, 0, %s29
      %s32 = ssub.s32 %s19, %s31
      %s33 = ssub.s32 %s20, %s27
      %s34 = sor.u32 %s32, %s33
      %p35 = scmp.eq.s32.totalorder %s34, 0
      %s37 = sadd.s32 %s36, 1
      %s38 = scalar_select %p35, %s36, %s37
      %p41 = pneg %p35
      %p42 = scmp.eq.s32.totalorder %s12, 1
      %p43 = por %p41, %p42
      %p44 = scmp.ne.s32.totalorder %s36, %s39
      %p45 = scmp.eq.s32.totalorder %s12, 0
      %p46 = por %p44, %p45
      %p47 = scmp.ne.s32.totalorder %s36, %s39
      %p48 = scmp.eq.s32.totalorder %s17, 1
      %p49 = por %p47, %p48
      %p50 = scmp.ne.s32.totalorder %s39, %s40
      %p51 = scmp.eq.s32.totalorder %s17, 0
      %p52 = por %p50, %p51
      %p53 = scmp.ne.s32.totalorder %s39, %s40
      %p54 = scmp.eq.s32.totalorder %s18, 1
      %p55 = por %p53, %p54
      %p57 = scmp.ne.s32.totalorder %s40, %s56
      %p58 = scmp.eq.s32.totalorder %s18, 0
      %p59 = por %p57, %p58
      %s61 = sadd.s32 %s60, 1
      %p64 = scmp.eq.s32.totalorder %s12, 1
      %p65 = scmp.ne.s32.totalorder %s60, %s62
      %p66 = scmp.eq.s32.totalorder %s12, 0
      %p67 = por %p65, %p66
      %p68 = scmp.ne.s32.totalorder %s60, %s62
      %p69 = scmp.eq.s32.totalorder %s17, 1
      %p70 = por %p68, %p69
      %p71 = scmp.ne.s32.totalorder %s62, %s63
      %p72 = scmp.eq.s32.totalorder %s17, 0
      %p73 = por %p71, %p72
      %p74 = scmp.ne.s32.totalorder %s62, %s63
      %p75 = scmp.eq.s32.totalorder %s18, 1
      %p76 = por %p74, %p75
      %p78 = scmp.ne.s32.totalorder %s63, %s77
      %p79 = scmp.eq.s32.totalorder %s18, 0
      %p80 = por %p78, %p79
      %s82 = sadd.s32 %s81, 1
      %p85 = scmp.eq.s32.totalorder %s12, 1
      %p86 = scmp.ne.s32.totalorder %s81, %s83
      %p87 = scmp.eq.s32.totalorder %s12, 0
      %p88 = por %p86, %p87
      %p89 = scmp.ne.s32.totalorder %s81, %s83
      %p90 = scmp.eq.s32.totalorder %s17, 1
      %p91 = por %p89, %p90
      %p92 = scmp.ne.s32.totalorder %s83, %s84
      %p93 = scmp.eq.s32.totalorder %s17, 0
      %p94 = por %p92, %p93
      %p95 = scmp.ne.s32.totalorder %s83, %s84
      %p96 = scmp.eq.s32.totalorder %s18, 1
      %p97 = por %p95, %p96
      %p99 = scmp.ne.s32.totalorder %s84, %s98
      %p100 = scmp.eq.s32.totalorder %s18, 0
      %p101 = por %p99, %p100
      %s102 = ssub.s32 %s19, %s31
      %s103 = ssub.s32 %s20, %s27
      %s104 = sor.u32 %s102, %s103
      %p105 = scmp.eq.s32.totalorder %s104, 0
      %s107 = sadd.s32 %s106, 1
      %s108 = scalar_select %p105, %s106, %s107
      %p111 = pneg %p105
      %p112 = scmp.eq.s32.totalorder %s12, 1
      %p113 = por %p111, %p112
      %p114 = scmp.ne.s32.totalorder %s106, %s109
      %p115 = scmp.eq.s32.totalorder %s12, 0
      %p116 = por %p114, %p115
      %p117 = scmp.ne.s32.totalorder %s106, %s109
      %p118 = scmp.eq.s32.totalorder %s17, 1
      %p119 = por %p117, %p118
      %p120 = scmp.ne.s32.totalorder %s109, %s110
      %p121 = scmp.eq.s32.totalorder %s17, 0
      %p122 = por %p120, %p121
      %p123 = scmp.ne.s32.totalorder %s109, %s110
      %p124 = scmp.eq.s32.totalorder %s18, 1
      %p125 = por %p123, %p124
      %p127 = scmp.ne.s32.totalorder %s110, %s126
      %p128 = scmp.eq.s32.totalorder %s18, 0
      %p129 = por %p127, %p128
      %p130 = scmp.le.s32.totalorder 1, %s12
      %p131 = scmp.lt.s32.totalorder %s12, 3
      %p132 = pnand %p130, %p131
      %p133 = pneg %p132
      // Predicated region
      $region9: #{tpu_custom_call.1} parent=5 // pred_check
        _
      $region10: #{tpu_custom_call.1} parent=5 // pred_check_branch
        %135 = sbr.rel (%p132) target = $region12
      $region11: #{tpu_custom_call.1} parent=5 // pred_region
        %s136 = ssub.s32 %s12, 1
        // Predicated region
        $region13: #{tpu_custom_call.1} parent=11 // pred_check
          %p137 = pneg %p73
        $region14: #{tpu_custom_call.1} parent=11 // pred_check_branch
          %139 = sbr.rel (%p137) target = $region16
        $region15: #{tpu_custom_call.1} parent=11 // pred_region
          _
        $region16: #{tpu_custom_call.1} parent=11 // pred_fallthru
          _
        // Predicated region
        $region17: #{tpu_custom_call.1} parent=11 // pred_check
          %p140 = pneg %p94
        $region18: #{tpu_custom_call.1} parent=11 // pred_check_branch
          %142 = sbr.rel (%p140) target = $region20
        $region19: #{tpu_custom_call.1} parent=11 // pred_region
          _
        $region20: #{tpu_custom_call.1} parent=11 // pred_fallthru
          _
      $region12: #{tpu_custom_call.1} parent=5 // pred_fallthru
        _
      %p143 = scmp.lt.s32.totalorder %s12, 2
      // Predicated region
      $region21: #{tpu_custom_call.1} parent=5 // pred_check
        %p144 = pneg %p143
      $region22: #{tpu_custom_call.1} parent=5 // pred_check_branch
        %146 = sbr.rel (%p144) target = $region24
      $region23: #{tpu_custom_call.1} parent=5 // pred_region
        // Predicated region
        $region25: #{tpu_custom_call.1} parent=23 // pred_check
          %p147 = pneg %p46
        $region26: #{tpu_custom_call.1} parent=23 // pred_check_branch
          %149 = sbr.rel (%p147) target = $region28
        $region27: #{tpu_custom_call.1} parent=23 // pred_region
          %p150 = scmp.lt.s32.totalorder %s19, 1
          %s151 = scalar_select %p150, %s19, 1
          %p152 = scmp.lt.s32.totalorder %s20, 0
          %s153 = scalar_select %p152, %s20, 0
          %s154 = sadd.s32 %s153, %s151
          %s155 = smul.addr %s154, 4
          %s156 = scalar_lea.vmem %s0, %s155
        $region28: #{tpu_custom_call.1} parent=23 // pred_fallthru
          _
      $region24: #{tpu_custom_call.1} parent=5 // pred_fallthru
        _
      %p157 = scmp.le.s32.totalorder 1, %s12
      %p158 = scmp.lt.s32.totalorder %s12, 3
      %p159 = pnand %p157, %p158
      %p160 = pneg %p159
      // Predicated region
      $region29: #{tpu_custom_call.1} parent=5 // pred_check
        _
      $region30: #{tpu_custom_call.1} parent=5 // pred_check_branch
        %162 = sbr.rel (%p159) target = $region32
      $region31: #{tpu_custom_call.1} parent=5 // pred_region
        %s163 = ssub.s32 %s12, 1
        %p164 = scmp.lt.s32.totalorder %s21, 1
        %s165 = scalar_select %p164, %s21, 1
        %p166 = scmp.lt.s32.totalorder %s22, 0
        %s167 = scalar_select %p166, %s22, 0
        %s168 = sadd.s32 %s167, %s165
        %s169 = smul.addr %s168, 4
        %s170 = scalar_lea.vmem %s0, %s169
        %p171 = pneg %p52
        %p172 = pneg %p49
        %p173 = pneg %p73
        %p174 = pneg %p70
        %p175 = pneg %p94
        %p176 = pneg %p91
        %p177 = pneg %p122
        %p178 = pneg %p119
        %s179 = sand.u32 %s109, 1
        %s180 = scalar_lea.sflag [#allocation3], %s179
        %s181 = sand.u32 %s109, 1
        %s182 = smul.addr %s181, 4
        %s183 = scalar_lea.vmem [#allocation2], %s182
        %p184 = scmp.lt.s32.totalorder %s21, 1
        %s185 = scalar_select %p184, %s21, 1
        %p186 = scmp.lt.s32.totalorder %s22, 0
        %s187 = scalar_select %p186, %s22, 0
        %s188 = sadd.s32 %s187, %s185
        %s189 = smul.addr %s188, 4
        %s190 = scalar_lea.vmem %s0, %s189
        %v191 = vld [vmem:[%s190] sm:$0xf]
        %v192 = vld [vmem:[%s1] sm:$0xf]
        %v193 = vld [vmem:[%s2] sm:$0xf]
        %195 = vset.pattern.permute.xlu0 0
        %196 = vperm.xlu0 %195, %v192
        %v197 = vpop.permute.xlu0 %196
        %v199 = vmul.f32 %v191, %v197
        %v200 = vand.u32 2147483647, %v199
        %vm201 = vcmp.le.f32.partialorder %v200, 0.7853982
        %vm202 = vcmp.lt.s32.totalorder %v199, 0
        %v203 = vand.u32 %v199, 2139095040
        %v204 = vshrl.u32 %v203, 23
        %v205 = vsub.s32 %v204, 127
        %v206 = vand.u32 2147483647, %v199
        %v207 = vand.u32 %v206, 8388607
        %v208 = vor.u32 %v207, 8388608
        %v209 = vsub.s32 0, %v208
        %v210 = vadd.s32 %v205, 1
        %vm211 = vcmp.gt.s32.totalorder %v210, 0
        %v212 = vsel %vm211, %v210, 0
        %v213 = vshrl.u32 %v212, 5
        %v214 = vand.u32 %v212, 31
        %v215 = vsub.s32 32, %v214
        %v216 = vshrl.u32 683565275, %v215
        %v217 = vshll.u32 683565275, %v214
        %v218 = vshrl.u32 2475754826, %v215
        %v219 = vor.u32 %v217, %v218
        %v220 = vshll.u32 2475754826, %v214
        %v221 = vshrl.u32 2131351028, %v215
        %v222 = vor.u32 %v220, %v221
        %v223 = vshll.u32 2131351028, %v214
        %v224 = vshrl.u32 2102212464, %v215
        %v225 = vor.u32 %v223, %v224
        %v226 = vshll.u32 2102212464, %v214
        %v227 = vshrl.u32 920167782, %v215
        %v228 = vor.u32 %v226, %v227
        %v229 = vshll.u32 920167782, %v214
        %v230 = vshrl.u32 1326507024, %v215
        %v231 = vor.u32 %v229, %v230
        %vm232 = vcmp.lt.s32.totalorder %v213, 1
        %vm233 = vcmp.lt.s32.totalorder %v213, 2
        %vm234 = vcmp.lt.s32.totalorder %v213, 3
        %vm235 = vcmp.lt.s32.totalorder %v213, 4
        %v236 = vsel %vm232, %v216, %v219
        %v237 = vsel %vm235, %v225, 2102212464
        %v238 = vsel %vm234, %v222, %v237
        %v239 = vsel %vm233, %v236, %v238
        %v240 = vsel %vm232, %v219, %v222
        %v241 = vsel %vm235, %v228, 920167782
        %v242 = vsel %vm234, %v225, %v241
        %v243 = vsel %vm233, %v240, %v242
        %v244 = vsel %vm232, %v222, %v225
        %v245 = vsel %vm235, %v231, 1326507024
        %v246 = vsel %vm234, %v228, %v245
        %v247 = vsel %vm233, %v244, %v246
        %v248 = vshll.u32 %v208, 8
        %v249 = vmul.u32.u64.compose %v248, %v247
        %v250 = vextract.low.u32 %v249
        %v251 = vextract.high.u32 %v249
        %v252 = vmul.u32.u64.compose %v248, %v243
        %v253 = vextract.low.u32 %v252
        %v254 = vextract.high.u32 %v252
        %v255 = vmul.u32 %v248, %v239
        %v256 = vadd.s32 %v251, %v253
        %vm257 = vc.u32 %v251, %v253
        %v258 = vadd.s32 %v254, 1
        %v259 = vsel %vm257, %v258, %v254
        %v260 = vadd.s32 %v255, %v259
        %v261 = vadd.s32 %v260, 536870912
        %v262 = vshrl.u32 %v261, 30
        %v263 = vshll.u32 %v262, 30
        %v264 = vsub.s32 %v260, %v263
        %vm265 = vcmp.lt.s32.totalorder %v264, 0
        %v266 = vsub.s32 0, %v264
        %v267 = vsel %vm265, %v266, %v264
        %v268 = vclz %v267
        %v269 = vsub.s32 %v268, 2
        %vm270 = vcmp.gt.s32.totalorder 0, %v269
        %v271 = vsel %vm270, 0, %v269
        %v272 = vsub.s32 32, %v271
        %v273 = vshll.u32 %v264, %v271
        %v274 = vshrl.u32 %v256, %v272
        %v275 = vor.u32 %v273, %v274
        %v276 = vsub.s32 4294967266, %v271
        %v277 = vadd.s32 %v276, 127
        %v278 = vshll.u32 %v277, 23
        %v279 = vor.u32 4788187, %v278
        %v280 = vand.u32 2147483647, %v279
        %v282 = vcvt.s32.f32 %v275
        %v283 = vmul.f32 %v282, %v280
        %v284 = vxor.u32 %v283, 2147483648
        %v285 = vsel %vm202, %v284, %v283
        %v286 = vsub.s32 4, %v262
        %v287 = vsel %vm202, %v286, %v262
        %v288 = vsel %vm201, %v199, %v285
        %v289 = vsel %vm201, 0, %v287
        %v290 = vcosq.f32.pop %v288
        %v291 = vsinq.f32.pop %v288
        %vm292 = vweird.f32 %v199
        %v293 = vadd.s32 %v289, 3
        %v294 = vand.u32 %v293, 3
        %vm295 = vcmp.lt.s32.totalorder %v294, 2
        %vm296 = vcmp.eq.s32.totalorder %v294, 0
        %v297 = vxor.u32 %v291, 2147483648
        %v298 = vsel %vm296, %v290, %v297
        %vm299 = vcmp.eq.s32.totalorder %v294, 2
        %v300 = vxor.u32 %v290, 2147483648
        %v301 = vsel %vm299, %v300, %v291
        %v302 = vsel %vm295, %v298, %v301
        %v303 = vsel %vm292, nan, %v302
        %v304 = vmul.f32 %v303, %v303
        %306 = vset.pattern.permute.xlu0 0
        %307 = vperm.xlu0 %306, %v193
        %v308 = vpop.permute.xlu0 %307
        %v310 = vmul.f32 %v308, %v304
        %v311 = vadd.f32 %v191, %v310
        %vm312 = vcmask 125952
        %313 = vst.msk [vmem:[%s183] sm:$0xf] %vm312, %v311
        %s314 = sand.u32 %s109, 1
        %s315 = scalar_lea.sflag [#allocation3], %s314
        %s316 = sand.u32 %s109, 1
        %s317 = smul.addr %s316, 4
        %s318 = scalar_lea.vmem [#allocation2], %s317
        // Predicated region
        $region33: #{tpu_custom_call.1} parent=31 // pred_check
          %p319 = pneg %p119
        $region34: #{tpu_custom_call.1} parent=31 // pred_check_branch
          %321 = sbr.rel (%p319) target = $region36
        $region35: #{tpu_custom_call.1} parent=31 // pred_region
          %s323 = ssub.s32 64, 64
          %324 = vsyncadd %s315, %s323
          %s325 = sadd.s32 %s22, %s21
          %s326 = smul.addr %s325, 64
          %s327 = scalar_lea.hbm %s3, %s326
          %s329 = sshll.u32 %s318, 4
          %s330 = int_to_ptr.vmem [resolvable:$true] %s329
          %332 = dma.vmem_to_hbm [thread:$0]  %s330, 64, %s327, %s315
        $region36: #{tpu_custom_call.1} parent=31 // pred_fallthru
          _
      $region32: #{tpu_custom_call.1} parent=5 // pred_fallthru
        _
      %p333 = scmp.le.s32.totalorder 2, %s12
      // Predicated region
      $region37: #{tpu_custom_call.1} parent=5 // pred_check
        %p334 = pneg %p333
      $region38: #{tpu_custom_call.1} parent=5 // pred_check_branch
        %336 = sbr.rel (%p334) target = $region40
      $region39: #{tpu_custom_call.1} parent=5 // pred_region
        %s337 = ssub.s32 %s12, 2
        // Predicated region
        $region41: #{tpu_custom_call.1} parent=39 // pred_check
          %p338 = pneg %p125
        $region42: #{tpu_custom_call.1} parent=39 // pred_check_branch
          %340 = sbr.rel (%p338) target = $region44
        $region43: #{tpu_custom_call.1} parent=39 // pred_region
          %s341 = sand.u32 %s110, 1
          %s342 = scalar_lea.sflag [#allocation3], %s341
          %s343 = sand.u32 %s110, 1
          %s344 = smul.addr %s343, 4
          %s345 = scalar_lea.vmem [#allocation2], %s344
          %346 = dma.done %s342, 64
        $region44: #{tpu_custom_call.1} parent=39 // pred_fallthru
          _
      $region40: #{tpu_custom_call.1} parent=5 // pred_fallthru
        _
    $region6: #{tpu_custom_call.1} parent=1 // loop_footer
      %s16 = sadd.s32 1, %s12
    $region7: #{tpu_custom_call.1} parent=1 // loop_footer_branch
      %11 = sbr.rel target = $region3
    $region8: #{tpu_custom_call.1} parent=1 // loop_exit
      _
    %347 = vsyncpa [#allocation3], 1
    %s348 = scalar_lea.sflag [#allocation3], 1
    %349 = vsyncpa %s348, 1

</llo_original>
